<compile_context>
chip_gen: v6e
topology: v6e:2x2x1
jax: 0.10.0
libtpu: 0.0.40
codegen_flags: <defaults>
</compile_context>

<pallas_src>
import functools
from dataclasses import dataclass

import jax
import jax.numpy as jnp
from jax.experimental import pallas as pl
from jax.experimental.pallas import tpu as pltpu


@dataclass(frozen=True)
class ClampConfig:
    clamp: bool = True
    clamp_min: float = -0.5
    clamp_max: float = 0.5


def _l2_block_kernel(pred_ref, gt_ref, out_ref, *, clamp, clamp_min, clamp_max,
                     valid_rows, valid_cols, need_row_mask, need_col_mask,
                     scalar_out, inv_count):
    """Per-block squared-error reduction.

    scalar_out=False: out[0, :] = sum over block rows of (pred - clamp(gt))^2
                      (lane-dense partial; cross-block reduce happens in wrapper).
    scalar_out=True : out[0, 0] = mean over ALL elements (single-block fast path).
    Ragged blocks are handled by masking rows/cols >= valid_rows/valid_cols.
    """
    pred = pred_ref[...].astype(jnp.float32)
    gt = gt_ref[...].astype(jnp.float32)
    if clamp:
        gt = jnp.clip(gt, jnp.float32(clamp_min), jnp.float32(clamp_max))
    diff = pred - gt
    tr, td = diff.shape

    if need_row_mask or need_col_mask:
        mask = None
        if need_row_mask:
            row0 = pl.program_id(0) * tr
            ridx = jax.lax.broadcasted_iota(jnp.int32, (tr, 1), 0) + row0
            mask = ridx < valid_rows
        if need_col_mask:
            col0 = pl.program_id(1) * td
            cidx = jax.lax.broadcasted_iota(jnp.int32, (1, td), 1) + col0
            cmask = cidx < valid_cols
            mask = cmask if mask is None else jnp.logical_and(mask, cmask)
        # Zero BEFORE squaring so garbage (NaN/Inf) in the unread tail is killed.
        diff = jnp.where(mask, diff, jnp.float32(0.0))

    sq = diff * diff
    if scalar_out:
        out_ref[...] = jnp.sum(sq, axis=(0, 1), keepdims=True) * jnp.float32(inv_count)
    else:
        # Sublane-direction reduction only -> stays on the VPU.
        out_ref[...] = jnp.sum(sq, axis=0, keepdims=True)


def _sublane_multiple(dtype) -> int:
    itemsize = jnp.dtype(dtype).itemsize
    if itemsize >= 4:
        return 8
    if itemsize == 2:
        return 16
    return 32


def l2_loss(pred, gt, clamp_config: ClampConfig, *, target_block_bytes=6 * 1024 * 1024):
    """Pallas equivalent of L2Loss.forward. Returns a scalar f32 (mean squared error)."""
    assert pred.shape == gt.shape, (pred.shape, gt.shape)
    assert pred.ndim == 2, "expects (N, _) inputs, as in the PyTorch module"
    n, d = pred.shape
    total_elems = n * d
    inv_count = 1.0 / float(total_elems)  # exact python-float reciprocal

    itemsize = max(jnp.dtype(pred.dtype).itemsize, jnp.dtype(gt.dtype).itemsize)
    sub_mult = max(_sublane_multiple(pred.dtype), _sublane_multiple(gt.dtype))

    # Lane-dense layout: if the last dim isn't 128-aligned but the total element
    # count is, a free contiguous reshape gives fully populated lanes/stores.
    rows, width = n, d
    if width % 128 != 0 and total_elems % 128 == 0:
        rows, width = total_elems // 128, 128
        pred = pred.reshape(rows, width)
        gt = gt.reshape(rows, width)

    # Column tiling (only for very wide, 128-aligned rows): keep blocks near the
    # byte budget and lane tiles 128-wide.
    if width % 128 == 0 and width * sub_mult * itemsize > target_block_bytes:
        tile_d = max(128, (target_block_bytes // (sub_mult * itemsize * 128)) * 128)
        tile_d = min(tile_d, width)
    else:
        tile_d = width
    num_col_blocks = pl.cdiv(width, tile_d)

    # Row tiling under the per-block byte budget (no padding: last block ragged).
    rows_ceil = pl.cdiv(rows, sub_mult) * sub_mult
    max_row_groups = max(1, target_block_bytes // max(1, tile_d * itemsize * sub_mult))
    tile_rows = min(max_row_groups * sub_mult, rows_ceil)
    num_row_blocks = pl.cdiv(rows, tile_rows)

    # v7x has 2 TensorCores: split a lone large block into >= 2 row blocks so the
    # "parallel" grid axis can shard across cores (no-op on v5e/v6e).
    per_input_bytes = rows * width * itemsize
    if (num_row_blocks * num_col_blocks == 1 and rows >= 2 * sub_mult
            and per_input_bytes > 2 * 1024 * 1024):
        tile_rows = max(sub_mult, pl.cdiv(pl.cdiv(rows, 2), sub_mult) * sub_mult)
        num_row_blocks = pl.cdiv(rows, tile_rows)

    need_row_mask = (num_row_blocks * tile_rows) != rows
    need_col_mask = (num_col_blocks * tile_d) != width
    scalar_out = (num_row_blocks * num_col_blocks) == 1

    kernel = functools.partial(
        _l2_block_kernel,
        clamp=clamp_config.clamp,
        clamp_min=clamp_config.clamp_min,
        clamp_max=clamp_config.clamp_max,
        valid_rows=rows,
        valid_cols=width,
        need_row_mask=need_row_mask,
        need_col_mask=need_col_mask,
        scalar_out=scalar_out,
        inv_count=inv_count,
    )

    # VMEM budget: 2 inputs x 2 buffers + f32 temporaries headroom, capped so it
    # stays comfortably inside v7x's 64 MiB-per-TC VMEM.
    block_bytes = tile_rows * tile_d * itemsize
    block_f32_bytes = tile_rows * tile_d * 4
    vmem_limit = int(min(48 * 2**20,
                         max(32 * 2**20, 4 * block_bytes + 3 * block_f32_bytes + 2 * 2**20)))

    in_specs = [
        pl.BlockSpec((tile_rows, tile_d), lambda i, j: (i, j)),
        pl.BlockSpec((tile_rows, tile_d), lambda i, j: (i, j)),
    ]
    if scalar_out:
        out_shape = jax.ShapeDtypeStruct((1, 1), jnp.float32)
        out_specs = pl.BlockSpec((1, 1), lambda i, j: (0, 0))
    else:
        out_shape = jax.ShapeDtypeStruct((num_row_blocks, width), jnp.float32)
        out_specs = pl.BlockSpec((1, tile_d), lambda i, j: (i, j))

    out = pl.pallas_call(
        kernel,
        out_shape=out_shape,
        grid=(num_row_blocks, num_col_blocks),
        in_specs=in_specs,
        out_specs=out_specs,
        compiler_params=pltpu.CompilerParams(
            # Every (i, j) block writes its own output tile -> safe to shard
            # across TensorCores (uses both TCs on v7x; no-op on v5e/v6e).
            dimension_semantics=("parallel", "parallel"),
            vmem_limit_bytes=vmem_limit,
        ),
    )(pred, gt)

    if scalar_out:
        return out[0, 0]
    # Tiny final reduction + mean over the ORIGINAL element count.
    return (jnp.sum(out, dtype=jnp.float32) * inv_count).astype(jnp.float32)


def _reference(pred, gt, cfg: ClampConfig):
    g = jnp.clip(gt, cfg.clamp_min, cfg.clamp_max) if cfg.clamp else gt
    return jnp.mean((pred.astype(jnp.float32) - g.astype(jnp.float32)) ** 2)


if __name__ == "__main__":
    key = jax.random.PRNGKey(0)
    cfg_clamp = ClampConfig(clamp=True, clamp_min=-0.5, clamp_max=0.5)
    cfg_noclamp = ClampConfig(clamp=False)

    def run_case(k, n, d, cfg, rtol):
        k1, k2 = jax.random.split(k)
        pred = jax.random.normal(k1, (n, d), dtype=jnp.float32)
        gt = jax.random.normal(k2, (n, d), dtype=jnp.float32)
        out = jax.jit(lambda p, g: l2_loss(p, g, cfg))(pred, gt)
        out = jax.block_until_ready(out)
        ref = _reference(pred, gt, cfg)
        assert jnp.allclose(out, ref, rtol=rtol, atol=1e-6), (n, d, out, ref)

    keys = jax.random.split(key, 5)
    # Small shape consistent with the module's (N, _) forward (fast path, clamp).
    run_case(keys[0], 32, 128, cfg_clamp, rtol=1e-6)
    # Ragged-ish medium shape, no clamp (single-block fast path).
    run_case(keys[1], 1000, 256, cfg_noclamp, rtol=1e-5)
    # Multi-block path with a ragged last row block (in-kernel row masking).
    run_case(keys[2], 4001, 256, cfg_clamp, rtol=5e-5)
    # d not a multiple of 128 but N*d is -> lane-dense reshape path.
    run_case(keys[3], 64, 64, cfg_noclamp, rtol=1e-6)
    # d not 128-aligned and N*d not 128-aligned -> masked-lane fallback + row mask.
    run_case(keys[4], 37, 100, cfg_clamp, rtol=1e-6)

    print("KERNEL_OK")
</pallas_src>

<mosaic_0001>
module attributes {stable_mosaic.version = 11 : i64} {
  func.func @_l2_block_kernel(%arg0: i32, %arg1: i32, %arg2: memref<32x128xf32, #tpu.memory_space<vmem>>, %arg3: memref<32x128xf32, #tpu.memory_space<vmem>>, %arg4: memref<1x1xf32, #tpu.memory_space<vmem>>) attributes {dimension_semantics = [#tpu.dimension_semantics<parallel>, #tpu.dimension_semantics<parallel>], iteration_bounds = array<i64: 1, 1>, scalar_prefetch = 0 : i64, scratch_operands = 0 : i64, tpu.core_type = #tpu.core_type<tc>, window_params = [{transform_indices = @transform_0, window_bounds = array<i64: 32, 128>}, {transform_indices = @transform_1, window_bounds = array<i64: 32, 128>}, {pipeline_mode = #tpu.pipeline_mode<synchronous>, transform_indices = @transform_2, window_bounds = array<i64: 1, 1>}]} {
    %c0 = arith.constant 0 : index
    %c0_0 = arith.constant 0 : index
    %0 = vector.load %arg2[%c0, %c0_0] : memref<32x128xf32, #tpu.memory_space<vmem>>, vector<32x128xf32>
    %c0_1 = arith.constant 0 : index
    %c0_2 = arith.constant 0 : index
    %1 = vector.load %arg3[%c0_1, %c0_2] : memref<32x128xf32, #tpu.memory_space<vmem>>, vector<32x128xf32>
    %cst = arith.constant -5.000000e-01 : f32
    %cst_3 = arith.constant 5.000000e-01 : f32
    %2 = vector.broadcast %cst : f32 to vector<32x128xf32>
    %3 = arith.maximumf %2, %1 : vector<32x128xf32>
    %4 = vector.broadcast %cst_3 : f32 to vector<32x128xf32>
    %5 = arith.minimumf %4, %3 : vector<32x128xf32>
    %6 = arith.subf %0, %5 : vector<32x128xf32>
    %7 = arith.mulf %6, %6 : vector<32x128xf32>
    %8 = vector.shape_cast %7 : vector<32x128xf32> to vector<1x32x128xf32>
    %cst_4 = arith.constant dense<0.000000e+00> : vector<1xf32>
    %9 = vector.multi_reduction <add>, %8, %cst_4 [1, 2] : vector<1x32x128xf32> to vector<1xf32>
    %10 = vector.shape_cast %9 : vector<1xf32> to vector<1x1x1xf32>
    %11 = vector.extract %10[0, 0, 0] : f32 from vector<1x1x1xf32>
    %12 = vector.broadcast %11 : f32 to vector<1x1xf32>
    %cst_5 = arith.constant 2.44140625E-4 : f32
    %13 = vector.broadcast %cst_5 : f32 to vector<1x1xf32>
    %14 = arith.mulf %12, %13 : vector<1x1xf32>
    %c0_6 = arith.constant 0 : index
    %c0_7 = arith.constant 0 : index
    %15 = vector.load %arg4[%c0_6, %c0_7] : memref<1x1xf32, #tpu.memory_space<vmem>>, vector<1x1xf32>
    tpu.vector_store %arg4[%c0_6, %c0_7], %14 {strides = array<i32>} : memref<1x1xf32, #tpu.memory_space<vmem>>, vector<1x1xf32>,
    return
  }
  func.func @transform_0(%arg0: i32, %arg1: i32) -> (i32, i32) {
    %c0_i32 = arith.constant 0 : i32
    return %arg0, %arg1 : i32, i32
  }
  func.func @transform_1(%arg0: i32, %arg1: i32) -> (i32, i32) {
    %c0_i32 = arith.constant 0 : i32
    return %arg0, %arg1 : i32, i32
  }
  func.func @transform_2(%arg0: i32, %arg1: i32) -> (i32, i32) {
    %c0_i32 = arith.constant 0 : i32
    %c0_i32_0 = arith.constant 0 : i32
    %c0_i32_1 = arith.constant 0 : i32
    return %c0_i32, %c0_i32_0 : i32, i32
  }
}

</mosaic_0001>

<llo_original>
// kernel: _lambda_.1
$region0: #{_lambda_.1}
  #allocation0 [shape = 'u32[]', space=smem, size = 0x4, offset = 0x4, fixed_abs, tag = 'smem constant byte address 0x4 - core index']
  #allocation1 [shape = 'u32[144,128]{1,0:T(1,128)}', space=vmem, size = 0x12000, scoped, tag = 'internal scratch']
  %s0 = inlined_call_operand.hbm [shape: f32[32,128], index: 0, kind: input, shape index: {}]
  %s1 = inlined_call_operand.hbm [shape: f32[32,128], index: 1, kind: input, shape index: {}]
  %s2 = inlined_call_operand.hbm [shape: f32[1,1], index: 2, kind: output, shape index: {}]
  %s3 = sld [smem:[#allocation0]]
  $region26: #{_lambda_.1} parent=0
    _
  %s5 = ssub.s32 1, %s3
  %s6 = scalar_select 0, %s5, %s3
  $region1: #{_lambda_.1} parent=0
    #allocation2 [shape = 'u8[16384]{0}', space=vmem, size = 0x4000, scoped, tag = 'input window, operand 0, single buffered']
    #allocation3 [shape = 's32[1]{0}', space=sflag, size = 0x4, scoped, tag = 'scoped memory for _lambda_.1']
    #allocation4 [shape = 's32[1]{0}', space=sflag, size = 0x4, scoped, tag = 'scoped memory for _lambda_.1']
    #allocation5 [shape = 'u8[16384]{0}', space=vmem, size = 0x4000, scoped, tag = 'input window, operand 1, single buffered']
    #allocation6 [shape = 's32[1]{0}', space=sflag, size = 0x4, scoped, tag = 'scoped memory for _lambda_.1']
    #allocation7 [shape = 'u8[512]{0}', space=vmem, size = 0x400, scoped, tag = 'output window, operand 0, single buffered']
    %7 = vsyncpa [#allocation3], 0
    %8 = vsyncpa [#allocation6], 0
    %9 = vsyncpa [#allocation4], 0
    // Predicated region
    $region2: #{_lambda_.1} parent=1 // pred_check
      _
    $region3: #{_lambda_.1} parent=1 // pred_check_branch
      %11 = sbr.rel (0) target = $region5
    $region4: #{_lambda_.1} parent=1 // pred_region
      %s13 = ssub.s32 512, 512
      %14 = vsyncadd [#allocation3], %s13
      %s15 = sshll.u32 [#allocation2], 4
      %s16 = int_to_ptr.vmem [resolvable:$true] %s15
      %21 = dma.hbm_to_vmem [thread:$0]  %s0, 512, %s16, [#allocation3], 128, 128, 8
    $region5: #{_lambda_.1} parent=1 // pred_fallthru
      _
    // Predicated region
    $region6: #{_lambda_.1} parent=1 // pred_check
      _
    $region7: #{_lambda_.1} parent=1 // pred_check_branch
      %23 = sbr.rel (0) target = $region9
    $region8: #{_lambda_.1} parent=1 // pred_region
      %s25 = ssub.s32 512, 512
      %26 = vsyncadd [#allocation6], %s25
      %s27 = sshll.u32 [#allocation5], 4
      %s28 = int_to_ptr.vmem [resolvable:$true] %s27
      %33 = dma.hbm_to_vmem [thread:$0]  %s1, 512, %s28, [#allocation6], 128, 128, 8
    $region9: #{_lambda_.1} parent=1 // pred_fallthru
      _
    // Predicated region
    $region10: #{_lambda_.1} parent=1 // pred_check
      _
    $region11: #{_lambda_.1} parent=1 // pred_check_branch
      %35 = sbr.rel (0) target = $region13
    $region12: #{_lambda_.1} parent=1 // pred_region
      %36 = dma.done [#allocation3], 512
    $region13: #{_lambda_.1} parent=1 // pred_fallthru
      _
    // Predicated region
    $region14: #{_lambda_.1} parent=1 // pred_check
      _
    $region15: #{_lambda_.1} parent=1 // pred_check_branch
      %38 = sbr.rel (0) target = $region17
    $region16: #{_lambda_.1} parent=1 // pred_region
      %39 = dma.done [#allocation6], 512
    $region17: #{_lambda_.1} parent=1 // pred_fallthru
      _
    %v40 = vld [vmem:[#allocation2] sm:$0xff]
    %v41 = vld [vmem:[#allocation2 + $0x8] sm:$0xff]
    %v42 = vld [vmem:[#allocation2 + $0x10] sm:$0xff]
    %v43 = vld [vmem:[#allocation2 + $0x18] sm:$0xff]
    %v44 = vld [vmem:[#allocation5] sm:$0xff]
    %v45 = vld [vmem:[#allocation5 + $0x8] sm:$0xff]
    %v46 = vld [vmem:[#allocation5 + $0x10] sm:$0xff]
    %v47 = vld [vmem:[#allocation5 + $0x18] sm:$0xff]
    %v48 = vmax.f32 %v44, -0.5
    %v49 = vmax.f32 %v45, -0.5
    %v50 = vmax.f32 %v46, -0.5
    %v51 = vmax.f32 %v47, -0.5
    %v52 = vmin.f32 %v48, 0.5
    %v53 = vmin.f32 %v49, 0.5
    %v54 = vmin.f32 %v50, 0.5
    %v55 = vmin.f32 %v51, 0.5
    %v56 = vsub.f32 %v40, %v52
    %v57 = vsub.f32 %v41, %v53
    %v58 = vsub.f32 %v42, %v54
    %v59 = vsub.f32 %v43, %v55
    %v60 = vmul.f32 %v56, %v56
    %v61 = vmul.f32 %v57, %v57
    %v62 = vmul.f32 %v58, %v58
    %v63 = vmul.f32 %v59, %v59
    %v64 = vadd.f32 %v60, %v61
    %v65 = vadd.f32 %v64, %v62
    %v66 = vadd.f32 %v65, %v63
    %67 = vadd.xlane.f32.xlu0 %v66
    %v68 = vpop.xlane.xlu0 %67
    %v69 = vrot.slane %v68, 4
    %v70 = vadd.f32 %v68, %v69
    %v71 = vrot.slane %v70, 2
    %v72 = vadd.f32 %v70, %v71
    %v73 = vrot.slane %v72, 1
    %v74 = vadd.f32 %v72, %v73
    %s75 = vtos %v74
    %v76 = vstv %s75
    %v77 = vmul.f32 %v76, 0.00024414063
    %vm78 = vcmask 0
    %79 = vst.msk [vmem:[#allocation7] sm:$0x1] %vm78, %v77
    // Predicated region
    $region18: #{_lambda_.1} parent=1 // pred_check
      _
    $region19: #{_lambda_.1} parent=1 // pred_check_branch
      %81 = sbr.rel (0) target = $region21
    $region20: #{_lambda_.1} parent=1 // pred_region
      %s83 = ssub.s32 16, 16
      %84 = vsyncadd [#allocation4], %s83
      %s86 = sshll.u32 [#allocation7], 4
      %s87 = int_to_ptr.vmem [resolvable:$true] %s86
      %89 = dma.vmem_to_hbm [thread:$0]  %s87, 16, %s2, [#allocation4]
    $region21: #{_lambda_.1} parent=1 // pred_fallthru
      _
    // Predicated region
    $region22: #{_lambda_.1} parent=1 // pred_check
      _
    $region23: #{_lambda_.1} parent=1 // pred_check_branch
      %91 = sbr.rel (0) target = $region25
    $region24: #{_lambda_.1} parent=1 // pred_region
      %92 = dma.done [#allocation4], 16
    $region25: #{_lambda_.1} parent=1 // pred_fallthru
      _
    %93 = vsyncpa [#allocation3], 1
    %94 = vsyncpa [#allocation6], 1
    %95 = vsyncpa [#allocation4], 1

</llo_original>
